<compile_context>
chip_gen: v7x
topology: tpu7x:2x2x1
jax: 0.10.0
libtpu: 0.0.40
codegen_flags: <defaults>
</compile_context>

<pallas_src>
import functools

import numpy as np
import jax
import jax.numpy as jnp
from jax.experimental import pallas as pl
from jax.experimental.pallas import tpu as pltpu

LANES = 128
SUBLANES = 8
CHUNK = 8            # rows per inner-loop step (one vreg per component plane)
TILE_S_MAX = 1024    # max rows of 128 samples per grid step (perf review)


def _num_tensorcores():
    # 2 TensorCores per chip only on v7x; everything else (v4/v5e/v6e) is 1,
    # so the row padding never exceeds a single tile (perf-review item).
    try:
        kind = jax.devices()[0].device_kind.lower()
    except Exception:
        return 1
    return 2 if ("v7" in kind or "7x" in kind) else 1


def _fast_recip(x):
    # EUP approximate reciprocal + one Newton-Raphson step (~20-22 bits),
    # keeps the divide off the VALU critical path. Add a 2nd Newton step if
    # tighter than ~1e-6 relative accuracy is ever needed.
    r = pl.reciprocal(x, approx=True)
    return r * (2.0 - x * r)


def _mahal_kernel(d_ref, out_ref, *, n_valid, tile_s, tiles_per_core, has_rot):
    core = pl.program_id(0)
    t = pl.program_id(1)

    @pl.when(t == 0)
    def _init():
        out_ref[...] = jnp.zeros_like(out_ref)

    # chunk-invariant local sample index inside one (8,128) vreg (hoisted)
    row_ids = jax.lax.broadcasted_iota(jnp.int32, (CHUNK, LANES), 0)
    lane_ids = jax.lax.broadcasted_iota(jnp.int32, (CHUNK, LANES), 1)
    local_idx = row_ids * LANES + lane_ids
    tile_base = (core * tiles_per_core + t) * tile_s

    def chunk_loss(c):
        r0 = pl.multiple_of(c * CHUNK, CHUNK)
        sl = pl.ds(r0, CHUNK)

        def plane(i):
            # upcast right after the load so math is always f32 (v5e VPU has
            # no bf16 VALU); with pack_dtype=f32 this is a no-op.
            return d_ref[i, sl, :].astype(jnp.float32)

        e0, e1, e2 = plane(0), plane(1), plane(2)
        l00, l10, l11 = plane(3), plane(4), plane(5)
        l20, l21, l22 = plane(6), plane(7), plane(8)

        # Q0 = L @ L^T (symmetric: 6 unique entries)
        q00 = l00 * l00
        q01 = l00 * l10
        q02 = l00 * l20
        q11 = l10 * l10 + l11 * l11
        q12 = l10 * l20 + l11 * l21
        q22 = l20 * l20 + l21 * l21 + l22 * l22

        if has_rot:
            r00, r01, r02 = plane(9), plane(10), plane(11)
            r10, r11, r12 = plane(12), plane(13), plane(14)
            r20, r21, r22 = plane(15), plane(16), plane(17)

            # Q' = R Q0 R^T computed row-at-a-time: each M row (R_i . Q0)
            # dies right after its Q'_i* entries are formed -> lower vreg
            # pressure than materializing all 9 M entries (perf review).
            m00 = r00 * q00 + r01 * q01 + r02 * q02
            m01 = r00 * q01 + r01 * q11 + r02 * q12
            m02 = r00 * q02 + r01 * q12 + r02 * q22
            p00 = m00 * r00 + m01 * r01 + m02 * r02
            p01 = m00 * r10 + m01 * r11 + m02 * r12
            p02 = m00 * r20 + m01 * r21 + m02 * r22

            m10 = r10 * q00 + r11 * q01 + r12 * q02
            m11 = r10 * q01 + r11 * q11 + r12 * q12
            m12 = r10 * q02 + r11 * q12 + r12 * q22
            p11 = m10 * r10 + m11 * r11 + m12 * r12
            p12 = m10 * r20 + m11 * r21 + m12 * r22

            m20 = r20 * q00 + r21 * q01 + r22 * q02
            m21 = r20 * q01 + r21 * q11 + r22 * q12
            m22 = r20 * q02 + r21 * q12 + r22 * q22
            p22 = m20 * r20 + m21 * r21 + m22 * r22

            q00, q01, q02, q11, q12, q22 = p00, p01, p02, p11, p12, p22

            # symmetric adjugate + determinant; md = inv_det * (e^T adj(Q) e)
            a00 = q11 * q22 - q12 * q12
            a01 = q02 * q12 - q01 * q22
            a02 = q01 * q12 - q02 * q11
            a11 = q00 * q22 - q02 * q02
            a12 = q01 * q02 - q00 * q12
            a22 = q00 * q11 - q01 * q01
            det = q00 * a00 + q01 * a01 + q02 * a02
            inv_det = _fast_recip(det)
            md = inv_det * (a00 * e0 * e0 + a11 * e1 * e1 + a22 * e2 * e2
                            + 2.0 * (a01 * e0 * e1 + a02 * e0 * e2
                                     + a12 * e1 * e2))
        else:
            # rotM is None: Q = L L^T, so md = ||L^{-1} e||^2 (fwd subst).
            y0 = e0 * _fast_recip(l00)
            y1 = (e1 - l10 * y0) * _fast_recip(l11)
            y2 = (e2 - l20 * y0 - l21 * y1) * _fast_recip(l22)
            md = y0 * y0 + y1 * y1 + y2 * y2

        norm_q = q00 + q11 + q22 + 2.0 * (q01 + q02 + q12)
        loss = md + jnp.log(norm_q + 1.0)

        # Padded lanes are zeros -> nan/inf in `loss`; TPU select discards the
        # unselected branch so masking here is sufficient (no identity-L pad).
        gidx = (tile_base + c * CHUNK) * LANES + local_idx
        return jnp.where(gidx < n_valid, loss, 0.0)

    n_chunks = tile_s // CHUNK
    acc = jax.lax.fori_loop(
        0, n_chunks, lambda c, a: a + chunk_loss(c),
        jnp.zeros((CHUNK, LANES), jnp.float32))
    out_ref[...] += acc


def mahalanobis_loss(pr_x, x, chol_cov, rotM=None, is_series=False,
                     pack_dtype=jnp.float32):
    """Pallas implementation of MahalanobisLoss.forward. Returns shape (1,).

    pack_dtype=jnp.bfloat16 halves HBM traffic (math stays f32 in-kernel);
    default f32 keeps full parity with the PyTorch module.
    """
    if is_series:
        B, T = pr_x.shape[0], pr_x.shape[1]
        pr2 = pr_x.reshape(B * T, 3)
        x2 = x.reshape(B * T, 3)
        c2 = chol_cov.reshape(B * T, 6)
        r2 = None if rotM is None else rotM.reshape(B * T, 9)
    else:
        pr2, x2, c2 = pr_x, x, chol_cov
        r2 = None if rotM is None else rotM.reshape(rotM.shape[0], 9)

    N = pr2.shape[0]
    has_rot = r2 is not None
    C = 18 if has_rot else 9

    itemsize = np.dtype(pack_dtype).itemsize
    row_align = SUBLANES if itemsize >= 4 else 16     # sub-32-bit packs 16 rows
    num_cores = _num_tensorcores()

    # sample s -> (row s//128, lane s%128); adaptive tile size (<= TILE_S_MAX)
    # chosen to minimize padded rows.
    rows = max(1, pl.cdiv(N, LANES))
    total_tiles = num_cores * max(1, pl.cdiv(rows, num_cores * TILE_S_MAX))
    tile_s = ((pl.cdiv(rows, total_tiles) + row_align - 1)
              // row_align) * row_align
    tiles_per_core = total_tiles // num_cores
    rows_pad = total_tiles * tile_s
    n_pad = rows_pad * LANES

    # Single-fusion pack: component-major (C, rows_pad, 128). Padded lanes are
    # zeros (masked in-kernel), so no zeros-base / identity-L / scatter pass.
    err_t = (pr2 - x2).astype(pack_dtype).T                  # (3, N)
    parts = [err_t, c2.astype(pack_dtype).T]                 # + (6, N)
    if has_rot:
        parts.append(r2.astype(pack_dtype).T)                # + (9, N)
    data_t = jnp.concatenate(parts, axis=0)                  # (C, N)
    packed = jnp.pad(data_t, ((0, 0), (0, n_pad - N))).reshape(
        C, rows_pad, LANES)

    # VMEM budget derived from the actual tile (double-buffered input +
    # output block + headroom) instead of a fixed constant.
    in_block_bytes = C * tile_s * LANES * itemsize
    vmem_limit = 2 * in_block_bytes + 4 * SUBLANES * LANES * 4 + (4 << 20)
    vmem_limit = int(min(64 << 20, max(16 << 20, vmem_limit)))

    kernel = functools.partial(
        _mahal_kernel, n_valid=N, tile_s=tile_s,
        tiles_per_core=tiles_per_core, has_rot=has_rot)

    partials = pl.pallas_call(
        kernel,
        out_shape=jax.ShapeDtypeStruct((num_cores, SUBLANES, LANES),
                                       jnp.float32),
        grid=(num_cores, tiles_per_core),
        in_specs=[pl.BlockSpec(
            (C, tile_s, LANES),
            lambda core, t: (0, core * tiles_per_core + t, 0))],
        out_specs=pl.BlockSpec((None, SUBLANES, LANES),
                               lambda core, t: (core, 0, 0)),
        compiler_params=pltpu.CompilerParams(
            # TODO(synk): on v7x, if xprof shows one TensorCore idle, switch
            # the leading axis to pltpu.CORE_PARALLEL (and consider
            # pipeline_mode=pl.Buffered(3) on the input spec) to force the
            # megacore split / deeper buffering.
            dimension_semantics=("parallel", "arbitrary"),
            vmem_limit_bytes=vmem_limit),
    )(packed)

    return (jnp.sum(partials) / N).reshape(1)


def _ref_loss(pr_x, x, chol_cov, rotM, is_series):
    """Pure-JAX reference mirroring the PyTorch module."""
    error = pr_x - x
    idx = [(0, 0), (1, 0), (1, 1), (2, 0), (2, 1), (2, 2)]
    prefix = chol_cov.shape[:-1]
    L = jnp.zeros(prefix + (3, 3), jnp.float32)
    for k, (j, i) in enumerate(idx):
        L = L.at[..., j, i].set(chol_cov[..., k])
    Q = L @ jnp.swapaxes(L, -1, -2)
    if rotM is not None:
        Q = rotM @ Q @ jnp.swapaxes(rotM, -1, -2)
    invQ = jnp.linalg.inv(Q)
    md = jnp.einsum('...i,...ij,...j->...', error, invQ, error)[..., None]
    normQ = jnp.sum(Q.reshape(prefix + (9,)), axis=-1, keepdims=True)
    md_loss = md + jnp.log(normQ + 1.0)
    if is_series:
        md_loss = jnp.mean(md_loss, axis=1)
    return jnp.mean(md_loss, axis=0)


if __name__ == "__main__":
    key = jax.random.PRNGKey(0)
    k1, k2, k3, k4 = jax.random.split(key, 4)

    # Series case: (batch=2, seq=8, dim=3), chol_cov (2,8,6), rotM (2,8,3,3)
    B, T = 2, 8
    pr_x = jax.random.normal(k1, (B, T, 3), jnp.float32)
    x = jax.random.normal(k2, (B, T, 3), jnp.float32)
    chol = 0.3 * jax.random.normal(k3, (B, T, 6), jnp.float32)
    chol = chol.at[..., 0].add(1.0).at[..., 2].add(1.0).at[..., 5].add(1.0)
    rotM = (jnp.eye(3, dtype=jnp.float32)
            + 0.1 * jax.random.normal(k4, (B, T, 3, 3), jnp.float32))

    loss_fn = jax.jit(mahalanobis_loss, static_argnames=("is_series",))

    out_series = jax.block_until_ready(
        loss_fn(pr_x, x, chol, rotM, is_series=True))
    ref_series = _ref_loss(pr_x, x, chol, rotM, True)

    # Non-series case (no rotM): (batch=2, dim=3), chol_cov (2,6)
    pr_ns, x_ns, chol_ns = pr_x[:, 0, :], x[:, 0, :], chol[:, 0, :]
    out_ns = jax.block_until_ready(
        loss_fn(pr_ns, x_ns, chol_ns, None, is_series=False))
    ref_ns = _ref_loss(pr_ns, x_ns, chol_ns, None, False)

    assert out_series.shape == (1,) and out_ns.shape == (1,)
    assert jnp.allclose(out_series, ref_series, rtol=1e-3, atol=1e-3), (
        out_series, ref_series)
    assert jnp.allclose(out_ns, ref_ns, rtol=1e-3, atol=1e-3), (out_ns, ref_ns)
    print("KERNEL_OK")
</pallas_src>

<mosaic_0001>
module attributes {stable_mosaic.version = 11 : i64} {
  func.func @_mahal_kernel(%arg0: i32, %arg1: i32, %arg2: memref<18x8x128xf32, #tpu.memory_space<vmem>>, %arg3: memref<1x8x128xf32, #tpu.memory_space<vmem>>) attributes {dimension_semantics = [#tpu.dimension_semantics<parallel>, #tpu.dimension_semantics<arbitrary>], iteration_bounds = array<i64: 1, 1>, scalar_prefetch = 0 : i64, scratch_operands = 0 : i64, tpu.core_type = #tpu.core_type<tc>, window_params = [{transform_indices = @transform_0, window_bounds = array<i64: 18, 8, 128>}, {transform_indices = @transform_1, window_bounds = array<i64: 1, 8, 128>}]} {
    %c0_i32 = arith.constant 0 : i32
    %0 = arith.cmpi eq, %arg1, %c0_i32 : i32
    %1 = arith.extui %0 : i1 to i32
    %c0_i32_0 = arith.constant 0 : i32
    %2 = arith.cmpi ne, %1, %c0_i32_0 : i32
    scf.if %2 {
      %cst_35 = arith.constant 0.000000e+00 : f32
      %232 = vector.broadcast %cst_35 : f32 to vector<8x128xf32>
      %c0_36 = arith.constant 0 : index
      %c0_37 = arith.constant 0 : index
      %c0_38 = arith.constant 0 : index
      %233 = vector.load %arg3[%c0_36, %c0_37, %c0_38] : memref<1x8x128xf32, #tpu.memory_space<vmem>>, vector<1x8x128xf32>
      %234 = vector.shape_cast %233 : vector<1x8x128xf32> to vector<8x128xf32>
      %235 = vector.shape_cast %232 : vector<8x128xf32> to vector<1x8x128xf32>
      tpu.vector_store %arg3[%c0_36, %c0_37, %c0_38], %235 {strides = array<i32>} : memref<1x8x128xf32, #tpu.memory_space<vmem>>, vector<1x8x128xf32>,
    } else {
    }
    %3 = tpu.iota {dimensions = array<i32: 0>} : vector<8x128xi32>
    %4 = tpu.iota {dimensions = array<i32: 1>} : vector<8x128xi32>
    %c128_i32 = arith.constant 128 : i32
    %5 = vector.broadcast %c128_i32 : i32 to vector<8x128xi32>
    %6 = arith.muli %3, %5 : vector<8x128xi32>
    %7 = arith.addi %6, %4 : vector<8x128xi32>
    %c1_i32 = arith.constant 1 : i32
    %8 = arith.muli %arg0, %c1_i32 : i32
    %9 = arith.addi %8, %arg1 : i32
    %c8_i32 = arith.constant 8 : i32
    %10 = arith.muli %9, %c8_i32 : i32
    %cst = arith.constant 0.000000e+00 : f32
    %11 = vector.broadcast %cst : f32 to vector<8x128xf32>
    %c0_i32_1 = arith.constant 0 : i32
    %c8_i32_2 = arith.constant 8 : i32
    %12 = arith.muli %c0_i32_1, %c8_i32_2 : i32
    %13 = tpu.assume_multiple %12, 8 : i32
    %c0 = arith.constant 0 : index
    %14 = arith.index_cast %13 : i32 to index
    %c0_3 = arith.constant 0 : index
    %15 = vector.load %arg2[%c0, %14, %c0_3] : memref<18x8x128xf32, #tpu.memory_space<vmem>>, vector<1x8x128xf32>
    %16 = vector.shape_cast %15 : vector<1x8x128xf32> to vector<8x128xf32>
    %c1 = arith.constant 1 : index
    %17 = arith.index_cast %13 : i32 to index
    %c0_4 = arith.constant 0 : index
    %18 = vector.load %arg2[%c1, %17, %c0_4] : memref<18x8x128xf32, #tpu.memory_space<vmem>>, vector<1x8x128xf32>
    %19 = vector.shape_cast %18 : vector<1x8x128xf32> to vector<8x128xf32>
    %c2 = arith.constant 2 : index
    %20 = arith.index_cast %13 : i32 to index
    %c0_5 = arith.constant 0 : index
    %21 = vector.load %arg2[%c2, %20, %c0_5] : memref<18x8x128xf32, #tpu.memory_space<vmem>>, vector<1x8x128xf32>
    %22 = vector.shape_cast %21 : vector<1x8x128xf32> to vector<8x128xf32>
    %c3 = arith.constant 3 : index
    %23 = arith.index_cast %13 : i32 to index
    %c0_6 = arith.constant 0 : index
    %24 = vector.load %arg2[%c3, %23, %c0_6] : memref<18x8x128xf32, #tpu.memory_space<vmem>>, vector<1x8x128xf32>
    %25 = vector.shape_cast %24 : vector<1x8x128xf32> to vector<8x128xf32>
    %c4 = arith.constant 4 : index
    %26 = arith.index_cast %13 : i32 to index
    %c0_7 = arith.constant 0 : index
    %27 = vector.load %arg2[%c4, %26, %c0_7] : memref<18x8x128xf32, #tpu.memory_space<vmem>>, vector<1x8x128xf32>
    %28 = vector.shape_cast %27 : vector<1x8x128xf32> to vector<8x128xf32>
    %c5 = arith.constant 5 : index
    %29 = arith.index_cast %13 : i32 to index
    %c0_8 = arith.constant 0 : index
    %30 = vector.load %arg2[%c5, %29, %c0_8] : memref<18x8x128xf32, #tpu.memory_space<vmem>>, vector<1x8x128xf32>
    %31 = vector.shape_cast %30 : vector<1x8x128xf32> to vector<8x128xf32>
    %c6 = arith.constant 6 : index
    %32 = arith.index_cast %13 : i32 to index
    %c0_9 = arith.constant 0 : index
    %33 = vector.load %arg2[%c6, %32, %c0_9] : memref<18x8x128xf32, #tpu.memory_space<vmem>>, vector<1x8x128xf32>
    %34 = vector.shape_cast %33 : vector<1x8x128xf32> to vector<8x128xf32>
    %c7 = arith.constant 7 : index
    %35 = arith.index_cast %13 : i32 to index
    %c0_10 = arith.constant 0 : index
    %36 = vector.load %arg2[%c7, %35, %c0_10] : memref<18x8x128xf32, #tpu.memory_space<vmem>>, vector<1x8x128xf32>
    %37 = vector.shape_cast %36 : vector<1x8x128xf32> to vector<8x128xf32>
    %c8 = arith.constant 8 : index
    %38 = arith.index_cast %13 : i32 to index
    %c0_11 = arith.constant 0 : index
    %39 = vector.load %arg2[%c8, %38, %c0_11] : memref<18x8x128xf32, #tpu.memory_space<vmem>>, vector<1x8x128xf32>
    %40 = vector.shape_cast %39 : vector<1x8x128xf32> to vector<8x128xf32>
    %41 = arith.mulf %25, %25 : vector<8x128xf32>
    %42 = arith.mulf %25, %28 : vector<8x128xf32>
    %43 = arith.mulf %25, %34 : vector<8x128xf32>
    %44 = arith.mulf %28, %28 : vector<8x128xf32>
    %45 = arith.mulf %31, %31 : vector<8x128xf32>
    %46 = arith.addf %44, %45 : vector<8x128xf32>
    %47 = arith.mulf %28, %34 : vector<8x128xf32>
    %48 = arith.mulf %31, %37 : vector<8x128xf32>
    %49 = arith.addf %47, %48 : vector<8x128xf32>
    %50 = arith.mulf %34, %34 : vector<8x128xf32>
    %51 = arith.mulf %37, %37 : vector<8x128xf32>
    %52 = arith.addf %50, %51 : vector<8x128xf32>
    %53 = arith.mulf %40, %40 : vector<8x128xf32>
    %54 = arith.addf %52, %53 : vector<8x128xf32>
    %c9 = arith.constant 9 : index
    %55 = arith.index_cast %13 : i32 to index
    %c0_12 = arith.constant 0 : index
    %56 = vector.load %arg2[%c9, %55, %c0_12] : memref<18x8x128xf32, #tpu.memory_space<vmem>>, vector<1x8x128xf32>
    %57 = vector.shape_cast %56 : vector<1x8x128xf32> to vector<8x128xf32>
    %c10 = arith.constant 10 : index
    %58 = arith.index_cast %13 : i32 to index
    %c0_13 = arith.constant 0 : index
    %59 = vector.load %arg2[%c10, %58, %c0_13] : memref<18x8x128xf32, #tpu.memory_space<vmem>>, vector<1x8x128xf32>
    %60 = vector.shape_cast %59 : vector<1x8x128xf32> to vector<8x128xf32>
    %c11 = arith.constant 11 : index
    %61 = arith.index_cast %13 : i32 to index
    %c0_14 = arith.constant 0 : index
    %62 = vector.load %arg2[%c11, %61, %c0_14] : memref<18x8x128xf32, #tpu.memory_space<vmem>>, vector<1x8x128xf32>
    %63 = vector.shape_cast %62 : vector<1x8x128xf32> to vector<8x128xf32>
    %c12 = arith.constant 12 : index
    %64 = arith.index_cast %13 : i32 to index
    %c0_15 = arith.constant 0 : index
    %65 = vector.load %arg2[%c12, %64, %c0_15] : memref<18x8x128xf32, #tpu.memory_space<vmem>>, vector<1x8x128xf32>
    %66 = vector.shape_cast %65 : vector<1x8x128xf32> to vector<8x128xf32>
    %c13 = arith.constant 13 : index
    %67 = arith.index_cast %13 : i32 to index
    %c0_16 = arith.constant 0 : index
    %68 = vector.load %arg2[%c13, %67, %c0_16] : memref<18x8x128xf32, #tpu.memory_space<vmem>>, vector<1x8x128xf32>
    %69 = vector.shape_cast %68 : vector<1x8x128xf32> to vector<8x128xf32>
    %c14 = arith.constant 14 : index
    %70 = arith.index_cast %13 : i32 to index
    %c0_17 = arith.constant 0 : index
    %71 = vector.load %arg2[%c14, %70, %c0_17] : memref<18x8x128xf32, #tpu.memory_space<vmem>>, vector<1x8x128xf32>
    %72 = vector.shape_cast %71 : vector<1x8x128xf32> to vector<8x128xf32>
    %c15 = arith.constant 15 : index
    %73 = arith.index_cast %13 : i32 to index
    %c0_18 = arith.constant 0 : index
    %74 = vector.load %arg2[%c15, %73, %c0_18] : memref<18x8x128xf32, #tpu.memory_space<vmem>>, vector<1x8x128xf32>
    %75 = vector.shape_cast %74 : vector<1x8x128xf32> to vector<8x128xf32>
    %c16 = arith.constant 16 : index
    %76 = arith.index_cast %13 : i32 to index
    %c0_19 = arith.constant 0 : index
    %77 = vector.load %arg2[%c16, %76, %c0_19] : memref<18x8x128xf32, #tpu.memory_space<vmem>>, vector<1x8x128xf32>
    %78 = vector.shape_cast %77 : vector<1x8x128xf32> to vector<8x128xf32>
    %c17 = arith.constant 17 : index
    %79 = arith.index_cast %13 : i32 to index
    %c0_20 = arith.constant 0 : index
    %80 = vector.load %arg2[%c17, %79, %c0_20] : memref<18x8x128xf32, #tpu.memory_space<vmem>>, vector<1x8x128xf32>
    %81 = vector.shape_cast %80 : vector<1x8x128xf32> to vector<8x128xf32>
    %82 = arith.mulf %57, %41 : vector<8x128xf32>
    %83 = arith.mulf %60, %42 : vector<8x128xf32>
    %84 = arith.addf %82, %83 : vector<8x128xf32>
    %85 = arith.mulf %63, %43 : vector<8x128xf32>
    %86 = arith.addf %84, %85 : vector<8x128xf32>
    %87 = arith.mulf %57, %42 : vector<8x128xf32>
    %88 = arith.mulf %60, %46 : vector<8x128xf32>
    %89 = arith.addf %87, %88 : vector<8x128xf32>
    %90 = arith.mulf %63, %49 : vector<8x128xf32>
    %91 = arith.addf %89, %90 : vector<8x128xf32>
    %92 = arith.mulf %57, %43 : vector<8x128xf32>
    %93 = arith.mulf %60, %49 : vector<8x128xf32>
    %94 = arith.addf %92, %93 : vector<8x128xf32>
    %95 = arith.mulf %63, %54 : vector<8x128xf32>
    %96 = arith.addf %94, %95 : vector<8x128xf32>
    %97 = arith.mulf %86, %57 : vector<8x128xf32>
    %98 = arith.mulf %91, %60 : vector<8x128xf32>
    %99 = arith.addf %97, %98 : vector<8x128xf32>
    %100 = arith.mulf %96, %63 : vector<8x128xf32>
    %101 = arith.addf %99, %100 : vector<8x128xf32>
    %102 = arith.mulf %86, %66 : vector<8x128xf32>
    %103 = arith.mulf %91, %69 : vector<8x128xf32>
    %104 = arith.addf %102, %103 : vector<8x128xf32>
    %105 = arith.mulf %96, %72 : vector<8x128xf32>
    %106 = arith.addf %104, %105 : vector<8x128xf32>
    %107 = arith.mulf %86, %75 : vector<8x128xf32>
    %108 = arith.mulf %91, %78 : vector<8x128xf32>
    %109 = arith.addf %107, %108 : vector<8x128xf32>
    %110 = arith.mulf %96, %81 : vector<8x128xf32>
    %111 = arith.addf %109, %110 : vector<8x128xf32>
    %112 = arith.mulf %66, %41 : vector<8x128xf32>
    %113 = arith.mulf %69, %42 : vector<8x128xf32>
    %114 = arith.addf %112, %113 : vector<8x128xf32>
    %115 = arith.mulf %72, %43 : vector<8x128xf32>
    %116 = arith.addf %114, %115 : vector<8x128xf32>
    %117 = arith.mulf %66, %42 : vector<8x128xf32>
    %118 = arith.mulf %69, %46 : vector<8x128xf32>
    %119 = arith.addf %117, %118 : vector<8x128xf32>
    %120 = arith.mulf %72, %49 : vector<8x128xf32>
    %121 = arith.addf %119, %120 : vector<8x128xf32>
    %122 = arith.mulf %66, %43 : vector<8x128xf32>
    %123 = arith.mulf %69, %49 : vector<8x128xf32>
    %124 = arith.addf %122, %123 : vector<8x128xf32>
    %125 = arith.mulf %72, %54 : vector<8x128xf32>
    %126 = arith.addf %124, %125 : vector<8x128xf32>
    %127 = arith.mulf %116, %66 : vector<8x128xf32>
    %128 = arith.mulf %121, %69 : vector<8x128xf32>
    %129 = arith.addf %127, %128 : vector<8x128xf32>
    %130 = arith.mulf %126, %72 : vector<8x128xf32>
    %131 = arith.addf %129, %130 : vector<8x128xf32>
    %132 = arith.mulf %116, %75 : vector<8x128xf32>
    %133 = arith.mulf %121, %78 : vector<8x128xf32>
    %134 = arith.addf %132, %133 : vector<8x128xf32>
    %135 = arith.mulf %126, %81 : vector<8x128xf32>
    %136 = arith.addf %134, %135 : vector<8x128xf32>
    %137 = arith.mulf %75, %41 : vector<8x128xf32>
    %138 = arith.mulf %78, %42 : vector<8x128xf32>
    %139 = arith.addf %137, %138 : vector<8x128xf32>
    %140 = arith.mulf %81, %43 : vector<8x128xf32>
    %141 = arith.addf %139, %140 : vector<8x128xf32>
    %142 = arith.mulf %75, %42 : vector<8x128xf32>
    %143 = arith.mulf %78, %46 : vector<8x128xf32>
    %144 = arith.addf %142, %143 : vector<8x128xf32>
    %145 = arith.mulf %81, %49 : vector<8x128xf32>
    %146 = arith.addf %144, %145 : vector<8x128xf32>
    %147 = arith.mulf %75, %43 : vector<8x128xf32>
    %148 = arith.mulf %78, %49 : vector<8x128xf32>
    %149 = arith.addf %147, %148 : vector<8x128xf32>
    %150 = arith.mulf %81, %54 : vector<8x128xf32>
    %151 = arith.addf %149, %150 : vector<8x128xf32>
    %152 = arith.mulf %141, %75 : vector<8x128xf32>
    %153 = arith.mulf %146, %78 : vector<8x128xf32>
    %154 = arith.addf %152, %153 : vector<8x128xf32>
    %155 = arith.mulf %151, %81 : vector<8x128xf32>
    %156 = arith.addf %154, %155 : vector<8x128xf32>
    %157 = arith.mulf %131, %156 : vector<8x128xf32>
    %158 = arith.mulf %136, %136 : vector<8x128xf32>
    %159 = arith.subf %157, %158 : vector<8x128xf32>
    %160 = arith.mulf %111, %136 : vector<8x128xf32>
    %161 = arith.mulf %106, %156 : vector<8x128xf32>
    %162 = arith.subf %160, %161 : vector<8x128xf32>
    %163 = arith.mulf %106, %136 : vector<8x128xf32>
    %164 = arith.mulf %111, %131 : vector<8x128xf32>
    %165 = arith.subf %163, %164 : vector<8x128xf32>
    %166 = arith.mulf %101, %156 : vector<8x128xf32>
    %167 = arith.mulf %111, %111 : vector<8x128xf32>
    %168 = arith.subf %166, %167 : vector<8x128xf32>
    %169 = arith.mulf %106, %111 : vector<8x128xf32>
    %170 = arith.mulf %101, %136 : vector<8x128xf32>
    %171 = arith.subf %169, %170 : vector<8x128xf32>
    %172 = arith.mulf %101, %131 : vector<8x128xf32>
    %173 = arith.mulf %106, %106 : vector<8x128xf32>
    %174 = arith.subf %172, %173 : vector<8x128xf32>
    %175 = arith.mulf %101, %159 : vector<8x128xf32>
    %176 = arith.mulf %106, %162 : vector<8x128xf32>
    %177 = arith.addf %175, %176 : vector<8x128xf32>
    %178 = arith.mulf %111, %165 : vector<8x128xf32>
    %179 = arith.addf %177, %178 : vector<8x128xf32>
    %180 = tpu.reciprocal %179 {approx = true} : vector<8x128xf32> -> vector<8x128xf32>
    %181 = arith.mulf %179, %180 : vector<8x128xf32>
    %cst_21 = arith.constant 2.000000e+00 : f32
    %182 = vector.broadcast %cst_21 : f32 to vector<8x128xf32>
    %183 = arith.subf %182, %181 : vector<8x128xf32>
    %184 = arith.mulf %180, %183 : vector<8x128xf32>
    %185 = arith.mulf %159, %16 : vector<8x128xf32>
    %186 = arith.mulf %185, %16 : vector<8x128xf32>
    %187 = arith.mulf %168, %19 : vector<8x128xf32>
    %188 = arith.mulf %187, %19 : vector<8x128xf32>
    %189 = arith.addf %186, %188 : vector<8x128xf32>
    %190 = arith.mulf %174, %22 : vector<8x128xf32>
    %191 = arith.mulf %190, %22 : vector<8x128xf32>
    %192 = arith.addf %189, %191 : vector<8x128xf32>
    %193 = arith.mulf %162, %16 : vector<8x128xf32>
    %194 = arith.mulf %193, %19 : vector<8x128xf32>
    %195 = arith.mulf %165, %16 : vector<8x128xf32>
    %196 = arith.mulf %195, %22 : vector<8x128xf32>
    %197 = arith.addf %194, %196 : vector<8x128xf32>
    %198 = arith.mulf %171, %19 : vector<8x128xf32>
    %199 = arith.mulf %198, %22 : vector<8x128xf32>
    %200 = arith.addf %197, %199 : vector<8x128xf32>
    %cst_22 = arith.constant 2.000000e+00 : f32
    %201 = vector.broadcast %cst_22 : f32 to vector<8x128xf32>
    %202 = arith.mulf %201, %200 : vector<8x128xf32>
    %203 = arith.addf %192, %202 : vector<8x128xf32>
    %204 = arith.mulf %184, %203 : vector<8x128xf32>
    %205 = arith.addf %101, %131 : vector<8x128xf32>
    %206 = arith.addf %205, %156 : vector<8x128xf32>
    %207 = arith.addf %106, %111 : vector<8x128xf32>
    %208 = arith.addf %207, %136 : vector<8x128xf32>
    %cst_23 = arith.constant 2.000000e+00 : f32
    %209 = vector.broadcast %cst_23 : f32 to vector<8x128xf32>
    %210 = arith.mulf %209, %208 : vector<8x128xf32>
    %211 = arith.addf %206, %210 : vector<8x128xf32>
    %cst_24 = arith.constant 1.000000e+00 : f32
    %212 = vector.broadcast %cst_24 : f32 to vector<8x128xf32>
    %213 = arith.addf %211, %212 : vector<8x128xf32>
    %214 = math.log %213 : vector<8x128xf32>
    %215 = arith.addf %204, %214 : vector<8x128xf32>
    %c8_i32_25 = arith.constant 8 : i32
    %216 = arith.muli %c0_i32_1, %c8_i32_25 : i32
    %217 = arith.addi %10, %216 : i32
    %c128_i32_26 = arith.constant 128 : i32
    %218 = arith.muli %217, %c128_i32_26 : i32
    %219 = vector.broadcast %218 : i32 to vector<8x128xi32>
    %220 = arith.addi %219, %7 : vector<8x128xi32>
    %c16_i32 = arith.constant 16 : i32
    %221 = vector.broadcast %c16_i32 : i32 to vector<8x128xi32>
    %222 = arith.cmpi slt, %220, %221 : vector<8x128xi32>
    %cst_27 = arith.constant 0.000000e+00 : f32
    %223 = vector.broadcast %cst_27 : f32 to vector<8x128xf32>
    %224 = arith.select %222, %215, %223 : vector<8x128xi1>, vector<8x128xf32>
    %225 = arith.addf %11, %224 : vector<8x128xf32>
    %c1_i32_28 = arith.constant 1 : i32
    %c0_29 = arith.constant 0 : index
    %c0_30 = arith.constant 0 : index
    %c0_31 = arith.constant 0 : index
    %226 = vector.load %arg3[%c0_29, %c0_30, %c0_31] : memref<1x8x128xf32, #tpu.memory_space<vmem>>, vector<1x8x128xf32>
    %227 = vector.shape_cast %226 : vector<1x8x128xf32> to vector<8x128xf32>
    %228 = arith.addf %227, %225 : vector<8x128xf32>
    %c0_32 = arith.constant 0 : index
    %c0_33 = arith.constant 0 : index
    %c0_34 = arith.constant 0 : index
    %229 = vector.load %arg3[%c0_32, %c0_33, %c0_34] : memref<1x8x128xf32, #tpu.memory_space<vmem>>, vector<1x8x128xf32>
    %230 = vector.shape_cast %229 : vector<1x8x128xf32> to vector<8x128xf32>
    %231 = vector.shape_cast %228 : vector<8x128xf32> to vector<1x8x128xf32>
    tpu.vector_store %arg3[%c0_32, %c0_33, %c0_34], %231 {strides = array<i32>} : memref<1x8x128xf32, #tpu.memory_space<vmem>>, vector<1x8x128xf32>,
    return
  }
  func.func @transform_0(%arg0: i32, %arg1: i32) -> (i32, i32, i32) {
    %c1_i32 = arith.constant 1 : i32
    %0 = arith.muli %arg0, %c1_i32 : i32
    %1 = arith.addi %0, %arg1 : i32
    %c0_i32 = arith.constant 0 : i32
    %c0_i32_0 = arith.constant 0 : i32
    %c0_i32_1 = arith.constant 0 : i32
    return %c0_i32, %1, %c0_i32_0 : i32, i32, i32
  }
  func.func @transform_1(%arg0: i32, %arg1: i32) -> (i32, i32, i32) {
    %c0_i32 = arith.constant 0 : i32
    %c0_i32_0 = arith.constant 0 : i32
    %c0_i32_1 = arith.constant 0 : i32
    return %arg0, %c0_i32, %c0_i32_0 : i32, i32, i32
  }
}

</mosaic_0001>

<llo_original>
// kernel: sub.0
$region0: #{sub.0}
  #allocation4 [shape = 's32[1]{0}', space=sflag, size = 0x4, scoped, tag = 'scoped memory for sub.0']
  %s0 = inlined_call_operand.hbm [shape: f32[2,8,3], index: 0, kind: input, shape index: {}]
  %s1 = inlined_call_operand.hbm [shape: f32[2,8,3], index: 1, kind: input, shape index: {}]
  %s2 = inlined_call_operand.vmem [shape: f32[2,8,3], index: 2, kind: output, shape index: {}]
  $region1: #{sub.0} parent=0
    #allocation0 [shape = 'u8[3072]{0}', space=vmem, size = 0xc00, scoped, tag = 'operand span for operand 0']
    #allocation1 [shape = 's32[1]{0}', space=sflag, size = 0x4, scoped, tag = 'scoped memory for sub.0']
    #allocation2 [shape = 'u8[3072]{0}', space=vmem, size = 0xc00, scoped, tag = 'operand span for operand 1']
    #allocation3 [shape = 's32[1]{0}', space=sflag, size = 0x4, scoped, tag = 'scoped memory for sub.0']
    %3 = vsyncpa [#allocation1], 0
    %4 = vsyncpa [#allocation3], 0
    %s6 = ssub.s32 96, 96
    %7 = vsyncadd [#allocation1], %s6
    %s8 = sshll.u32 [#allocation0], 4
    %s9 = int_to_ptr.vmem [resolvable:$true] %s8
    %14 = dma.hbm_to_vmem [thread:$0]  %s0, 96, %s9, [#allocation1], 32, 32, 2
    %s16 = ssub.s32 96, 96
    %17 = vsyncadd [#allocation3], %s16
    %s18 = sshll.u32 [#allocation2], 4
    %s19 = int_to_ptr.vmem [resolvable:$true] %s18
    %24 = dma.hbm_to_vmem [thread:$0]  %s1, 96, %s19, [#allocation3], 32, 32, 2
    %25 = dma.done [#allocation1], 96
    %26 = dma.done [#allocation3], 96
    %v27 = vld [vmem:[#allocation0] sm:$0x3]
    %v28 = vld [vmem:[#allocation2] sm:$0x3]
    %29 = xla_tuple %v27, %v28
    %30 = xla_tuple %29
    %v31 = vsub.f32 %v27, %v28
    %32 = xla_tuple %v31
    %33 = vst [vmem:[%s2] sm:$0x3] %v31
    %s34 = scalar_lea.vmem [#allocation0], 2
    %v35 = vld [vmem:[%s34] sm:$0x3]
    %s36 = scalar_lea.vmem [#allocation2], 2
    %v37 = vld [vmem:[%s36] sm:$0x3]
    %38 = xla_tuple %v35, %v37
    %39 = xla_tuple %38
    %v40 = vsub.f32 %v35, %v37
    %41 = xla_tuple %v40
    %s42 = scalar_lea.vmem %s2, 2
    %43 = vst [vmem:[%s42] sm:$0x3] %v40
    %s44 = scalar_lea.vmem [#allocation0], 4
    %v45 = vld [vmem:[%s44] sm:$0x3]
    %s46 = scalar_lea.vmem [#allocation2], 4
    %v47 = vld [vmem:[%s46] sm:$0x3]
    %48 = xla_tuple %v45, %v47
    %49 = xla_tuple %48
    %v50 = vsub.f32 %v45, %v47
    %51 = xla_tuple %v50
    %s52 = scalar_lea.vmem %s2, 4
    %53 = vst [vmem:[%s52] sm:$0x3] %v50
    %54 = vsyncpa [#allocation1], 1
    %55 = vsyncpa [#allocation3], 1

// kernel: mahalanobis_loss.1
$region0: #{mahalanobis_loss.1}
  #allocation0 [shape = 'u32[]', space=smem, size = 0x4, offset = 0x4, fixed_abs, tag = 'smem constant byte address 0x4 - core index']
  #allocation1 [shape = 'u32[144,128]{1,0:T(1,128)}', space=vmem, size = 0x12000, scoped, tag = 'internal scratch']
  %s0 = inlined_call_operand.vmem [shape: f32[18,8,128], index: 0, kind: input, shape index: {}]
  %s1 = inlined_call_operand.vmem [shape: f32[1,8,128], index: 1, kind: output, shape index: {}]
  %s2 = sld [smem:[#allocation0]]
  $region18: #{mahalanobis_loss.1} parent=0
    _
  %s4 = ssub.s32 1, %s2
  %s5 = scalar_select 0, %s4, %s2
  // Predicated region
  $region2: #{mahalanobis_loss.1} parent=0 // pred_check
    _
  $region3: #{mahalanobis_loss.1} parent=0 // pred_check_branch
    %7 = sbr.rel (0) target = $region5
  $region4: #{mahalanobis_loss.1} parent=0 // pred_region
    %s8 = sadd.s32 0, 0
    %p9 = scmp.lt.s32.totalorder %s8, 0
    %s10 = scalar_select %p9, %s8, 0
    %s11 = smul.addr %s10, 8
    %s12 = scalar_lea.vmem %s0, %s11
    %s13 = sadd.s32 0, 0
  $region5: #{mahalanobis_loss.1} parent=0 // pred_fallthru
    _
  %s14 = sadd.s32 0, 0
  %p15 = scmp.lt.s32.totalorder %s14, 0
  %s16 = scalar_select %p15, %s14, 0
  %s17 = smul.addr %s16, 8
  %s18 = scalar_lea.vmem %s0, %s17
  %s19 = sadd.s32 0, 0
  %p20 = scmp.lt.s32.totalorder %s19, 0
  %s21 = scalar_select %p20, %s19, 0
  %s22 = smul.addr %s21, 8
  %s23 = scalar_lea.vmem %s0, %s22
  %s24 = sadd.s32 0, 0
  %p25 = scmp.eq.s32.totalorder 0, 0
  // Predicated region
  $region6: #{mahalanobis_loss.1} parent=0 // pred_check
    %p26 = pneg %p25
  $region7: #{mahalanobis_loss.1} parent=0 // pred_check_branch
    %28 = sbr.rel (%p26) target = $region9
  $region8: #{mahalanobis_loss.1} parent=0 // pred_region
    %29 = vst [vmem:[%s1] sm:$0xff] 0.0
  $region9: #{mahalanobis_loss.1} parent=0 // pred_fallthru
    _
  %v30 = vlaneseq
  %v31 = vshrl.u32 %v30, 7
  %v32 = vlaneseq
  %v33 = vand.u32 %v32, 127
  %v34 = vmul.u32 %v31, 128
  %v35 = vadd.s32 %v34, %v33
  %s36 = sadd.s32 0, 0
  %v37 = vld [vmem:[%s23] sm:$0xff]
  %s38 = sadd.s32 0, 8
  %s39 = scalar_lea.vmem %s23, %s38
  %v40 = vld [vmem:[%s39] sm:$0xff]
  %s41 = sadd.s32 0, 16
  %s42 = scalar_lea.vmem %s23, %s41
  %v43 = vld [vmem:[%s42] sm:$0xff]
  %s44 = sadd.s32 0, 24
  %s45 = scalar_lea.vmem %s23, %s44
  %v46 = vld [vmem:[%s45] sm:$0xff]
  %s47 = sadd.s32 0, 32
  %s48 = scalar_lea.vmem %s23, %s47
  %v49 = vld [vmem:[%s48] sm:$0xff]
  %s50 = sadd.s32 0, 40
  %s51 = scalar_lea.vmem %s23, %s50
  %v52 = vld [vmem:[%s51] sm:$0xff]
  %s53 = sadd.s32 0, 48
  %s54 = scalar_lea.vmem %s23, %s53
  %v55 = vld [vmem:[%s54] sm:$0xff]
  %s56 = sadd.s32 0, 56
  %s57 = scalar_lea.vmem %s23, %s56
  %v58 = vld [vmem:[%s57] sm:$0xff]
  %s59 = sadd.s32 0, 64
  %s60 = scalar_lea.vmem %s23, %s59
  %v61 = vld [vmem:[%s60] sm:$0xff]
  %v62 = vmul.f32 %v46, %v46
  %v63 = vmul.f32 %v46, %v49
  %v64 = vmul.f32 %v46, %v55
  %v65 = vmul.f32 %v49, %v49
  %v66 = vmul.f32 %v52, %v52
  %v67 = vadd.f32 %v65, %v66
  %v68 = vmul.f32 %v49, %v55
  %v69 = vmul.f32 %v52, %v58
  %v70 = vadd.f32 %v68, %v69
  %v71 = vmul.f32 %v55, %v55
  %v72 = vmul.f32 %v58, %v58
  %v73 = vadd.f32 %v71, %v72
  %v74 = vmul.f32 %v61, %v61
  %v75 = vadd.f32 %v73, %v74
  %s76 = sadd.s32 0, 72
  %s77 = scalar_lea.vmem %s23, %s76
  %v78 = vld [vmem:[%s77] sm:$0xff]
  %s79 = sadd.s32 0, 80
  %s80 = scalar_lea.vmem %s23, %s79
  %v81 = vld [vmem:[%s80] sm:$0xff]
  %s82 = sadd.s32 0, 88
  %s83 = scalar_lea.vmem %s23, %s82
  %v84 = vld [vmem:[%s83] sm:$0xff]
  %s85 = sadd.s32 0, 96
  %s86 = scalar_lea.vmem %s23, %s85
  %v87 = vld [vmem:[%s86] sm:$0xff]
  %s88 = sadd.s32 0, 104
  %s89 = scalar_lea.vmem %s23, %s88
  %v90 = vld [vmem:[%s89] sm:$0xff]
  %s91 = sadd.s32 0, 112
  %s92 = scalar_lea.vmem %s23, %s91
  %v93 = vld [vmem:[%s92] sm:$0xff]
  %s94 = sadd.s32 0, 120
  %s95 = scalar_lea.vmem %s23, %s94
  %v96 = vld [vmem:[%s95] sm:$0xff]
  %s97 = sadd.s32 0, 128
  %s98 = scalar_lea.vmem %s23, %s97
  %v99 = vld [vmem:[%s98] sm:$0xff]
  %s100 = sadd.s32 0, 136
  %s101 = scalar_lea.vmem %s23, %s100
  %v102 = vld [vmem:[%s101] sm:$0xff]
  %v103 = vmul.f32 %v78, %v62
  %v104 = vmul.f32 %v81, %v63
  %v105 = vadd.f32 %v103, %v104
  %v106 = vmul.f32 %v84, %v64
  %v107 = vadd.f32 %v105, %v106
  %v108 = vmul.f32 %v78, %v63
  %v109 = vmul.f32 %v81, %v67
  %v110 = vadd.f32 %v108, %v109
  %v111 = vmul.f32 %v84, %v70
  %v112 = vadd.f32 %v110, %v111
  %v113 = vmul.f32 %v78, %v64
  %v114 = vmul.f32 %v81, %v70
  %v115 = vadd.f32 %v113, %v114
  %v116 = vmul.f32 %v84, %v75
  %v117 = vadd.f32 %v115, %v116
  %v118 = vmul.f32 %v107, %v78
  %v119 = vmul.f32 %v112, %v81
  %v120 = vadd.f32 %v118, %v119
  %v121 = vmul.f32 %v117, %v84
  %v122 = vadd.f32 %v120, %v121
  %v123 = vmul.f32 %v107, %v87
  %v124 = vmul.f32 %v112, %v90
  %v125 = vadd.f32 %v123, %v124
  %v126 = vmul.f32 %v117, %v93
  %v127 = vadd.f32 %v125, %v126
  %v128 = vmul.f32 %v107, %v96
  %v129 = vmul.f32 %v112, %v99
  %v130 = vadd.f32 %v128, %v129
  %v131 = vmul.f32 %v117, %v102
  %v132 = vadd.f32 %v130, %v131
  %v133 = vmul.f32 %v87, %v62
  %v134 = vmul.f32 %v90, %v63
  %v135 = vadd.f32 %v133, %v134
  %v136 = vmul.f32 %v93, %v64
  %v137 = vadd.f32 %v135, %v136
  %v138 = vmul.f32 %v87, %v63
  %v139 = vmul.f32 %v90, %v67
  %v140 = vadd.f32 %v138, %v139
  %v141 = vmul.f32 %v93, %v70
  %v142 = vadd.f32 %v140, %v141
  %v143 = vmul.f32 %v87, %v64
  %v144 = vmul.f32 %v90, %v70
  %v145 = vadd.f32 %v143, %v144
  %v146 = vmul.f32 %v93, %v75
  %v147 = vadd.f32 %v145, %v146
  %v148 = vmul.f32 %v137, %v87
  %v149 = vmul.f32 %v142, %v90
  %v150 = vadd.f32 %v148, %v149
  %v151 = vmul.f32 %v147, %v93
  %v152 = vadd.f32 %v150, %v151
  %v153 = vmul.f32 %v137, %v96
  %v154 = vmul.f32 %v142, %v99
  %v155 = vadd.f32 %v153, %v154
  %v156 = vmul.f32 %v147, %v102
  %v157 = vadd.f32 %v155, %v156
  %v158 = vmul.f32 %v96, %v62
  %v159 = vmul.f32 %v99, %v63
  %v160 = vadd.f32 %v158, %v159
  %v161 = vmul.f32 %v102, %v64
  %v162 = vadd.f32 %v160, %v161
  %v163 = vmul.f32 %v96, %v63
  %v164 = vmul.f32 %v99, %v67
  %v165 = vadd.f32 %v163, %v164
  %v166 = vmul.f32 %v102, %v70
  %v167 = vadd.f32 %v165, %v166
  %v168 = vmul.f32 %v96, %v64
  %v169 = vmul.f32 %v99, %v70
  %v170 = vadd.f32 %v168, %v169
  %v171 = vmul.f32 %v102, %v75
  %v172 = vadd.f32 %v170, %v171
  %v173 = vmul.f32 %v162, %v96
  %v174 = vmul.f32 %v167, %v99
  %v175 = vadd.f32 %v173, %v174
  %v176 = vmul.f32 %v172, %v102
  %v177 = vadd.f32 %v175, %v176
  %v178 = vmul.f32 %v152, %v177
  %v179 = vmul.f32 %v157, %v157
  %v180 = vsub.f32 %v178, %v179
  %v181 = vmul.f32 %v132, %v157
  %v182 = vmul.f32 %v127, %v177
  %v183 = vsub.f32 %v181, %v182
  %v184 = vmul.f32 %v127, %v157
  %v185 = vmul.f32 %v132, %v152
  %v186 = vsub.f32 %v184, %v185
  %v187 = vmul.f32 %v122, %v177
  %v188 = vmul.f32 %v132, %v132
  %v189 = vsub.f32 %v187, %v188
  %v190 = vmul.f32 %v127, %v132
  %v191 = vmul.f32 %v122, %v157
  %v192 = vsub.f32 %v190, %v191
  %v193 = vmul.f32 %v122, %v152
  %v194 = vmul.f32 %v127, %v127
  %v195 = vsub.f32 %v193, %v194
  %v196 = vmul.f32 %v122, %v180
  %v197 = vmul.f32 %v127, %v183
  %v198 = vadd.f32 %v196, %v197
  %v199 = vmul.f32 %v132, %v186
  %v200 = vadd.f32 %v198, %v199
  %v201 = vrcp.pop %v200
  %v202 = vmul.f32 %v200, %v201
  %v203 = vsub.f32 2.0, %v202
  %v204 = vmul.f32 %v201, %v203
  %v205 = vmul.f32 %v180, %v37
  %v206 = vmul.f32 %v205, %v37
  %v207 = vmul.f32 %v189, %v40
  %v208 = vmul.f32 %v207, %v40
  %v209 = vadd.f32 %v206, %v208
  %v210 = vmul.f32 %v195, %v43
  %v211 = vmul.f32 %v210, %v43
  %v212 = vadd.f32 %v209, %v211
  %v213 = vmul.f32 %v183, %v37
  %v214 = vmul.f32 %v213, %v40
  %v215 = vmul.f32 %v186, %v37
  %v216 = vmul.f32 %v215, %v43
  %v217 = vadd.f32 %v214, %v216
  %v218 = vmul.f32 %v192, %v40
  %v219 = vmul.f32 %v218, %v43
  %v220 = vadd.f32 %v217, %v219
  %v221 = vmul.f32 %v220, 2.0
  %v222 = vadd.f32 %v212, %v221
  %v223 = vmul.f32 %v204, %v222
  %v224 = vadd.f32 %v122, %v152
  %v225 = vadd.f32 %v224, %v177
  %v226 = vadd.f32 %v127, %v132
  %v227 = vadd.f32 %v226, %v157
  %v228 = vmul.f32 %v227, 2.0
  %v229 = vadd.f32 %v225, %v228
  %v230 = vadd.f32 %v229, 1.0
  %v231 = vlog2.pop %v230
  %v232 = vmul.f32 %v231, 0.6931472
  %v233 = vadd.f32 %v223, %v232
  %s234 = smul.u32 %s36, 1024
  %v235 = vstv %s234
  %v236 = vadd.s32 %v235, %v35
  %vm237 = vcmp.lt.s32.totalorder %v236, 16
  %v238 = vsel %vm237, %v233, 0.0
  %v239 = vadd.f32 %v238, 0.0
  %v240 = vld [vmem:[%s1] sm:$0xff]
  %v241 = vadd.f32 %v240, %v239
  %242 = vst [vmem:[%s1] sm:$0xff] %v241
  // Predicated region
  $region10: #{mahalanobis_loss.1} parent=0 // pred_check
    _
  $region11: #{mahalanobis_loss.1} parent=0 // pred_check_branch
    %244 = sbr.rel (0) target = $region13
  $region12: #{mahalanobis_loss.1} parent=0 // pred_region
    _
  $region13: #{mahalanobis_loss.1} parent=0 // pred_fallthru
    _
  // Predicated region
  $region14: #{mahalanobis_loss.1} parent=0 // pred_check
    _
  $region15: #{mahalanobis_loss.1} parent=0 // pred_check_branch
    %246 = sbr.rel (0) target = $region17
  $region16: #{mahalanobis_loss.1} parent=0 // pred_region
    _
  $region17: #{mahalanobis_loss.1} parent=0 // pred_fallthru
    _

</llo_original>
